<compile_context>
chip_gen: v7x
topology: tpu7x:2x2x1
jax: 0.10.0
libtpu: 0.0.40
codegen_flags: <defaults>
</compile_context>

<pallas_src>
import functools

import jax
import jax.numpy as jnp
from jax.experimental import pallas as pl
from jax.experimental.pallas import tpu as pltpu

LANE = 128
MAX_TILE_ROWS = 2048      # (2048, 128) f32 block = 1 MiB per input per buffer
NUM_CORE_SPLITS = 2       # leading parallel axis (exploited by v7x megacore)


def _cdiv(a, b):
    return -(-a // b)


def _round_up(a, b):
    return _cdiv(a, b) * b


def _make_kernel(tile_rows, blocks_per_split, n_elem, need_mask):
    def kernel(x_ref, t_ref, out_ref):
        c = pl.program_id(0)
        i = pl.program_id(1)

        @pl.when(i == 0)
        def _():
            out_ref[...] = jnp.zeros_like(out_ref)

        x = x_ref[...].astype(jnp.float32)
        t = t_ref[...].astype(jnp.float32)

        # Sigmoid + stable BCE-with-logits via tanh: 2 EUP ops / element
        # (tanh, log), no exp, no divide.
        #   p                 = sigmoid(x)      = 0.5*(tanh(x/2)+1)
        #   log(sigmoid(|x|)) = log(0.5*(|tanh(x/2)|+1))
        #   bce               = max(x,0) - x*t - log(sigmoid(|x|))
        # NOTE: PyTorch's F.binary_cross_entropy(sigmoid(x), t) clamps log
        # terms at -100; this logits form matches it to f32 accuracy for all
        # non-saturated |x| and is better behaved at saturation.
        th = jnp.tanh(0.5 * x)
        p = 0.5 * (th + 1.0)
        log_sig_abs = jnp.log(0.5 * (jnp.abs(th) + 1.0))
        bce = jnp.maximum(x, 0.0) - x * t - log_sig_abs

        if need_mask:
            row = jax.lax.broadcasted_iota(jnp.int32, (tile_rows, LANE), 0)
            lane = jax.lax.broadcasted_iota(jnp.int32, (tile_rows, LANE), 1)
            base_row = (c * blocks_per_split + i) * tile_rows
            idx = (base_row + row) * LANE + lane
            mask = idx < n_elem
            zero = jnp.zeros_like(x)
            p = jnp.where(mask, p, zero)
            t = jnp.where(mask, t, zero)
            bce = jnp.where(mask, bce, zero)

        pt = p * t  # computed after masking so it is masked for free

        def fold(v):  # (tile_rows, 128) -> (8, 128): pure vreg adds, no XLU
            return v.reshape(tile_rows // 8, 8, LANE).sum(axis=0)

        out_ref[0, 0] += fold(pt)    # sum(p * t)
        out_ref[0, 1] += fold(p)     # sum(p)
        out_ref[0, 2] += fold(t)     # sum(t)
        out_ref[0, 3] += fold(bce)   # sum(bce)

    return kernel


def _partial_sums(x2d, t2d, n_elem):
    rows = x2d.shape[0]
    tile_rows = min(MAX_TILE_ROWS, _round_up(rows, 32))
    num_blocks = _cdiv(rows, tile_rows)
    # Don't waste a whole (masked) grid sweep on tiny inputs.
    nc = NUM_CORE_SPLITS if num_blocks >= NUM_CORE_SPLITS else 1
    blocks_per_split = _cdiv(num_blocks, nc)
    need_mask = (nc * blocks_per_split * tile_rows * LANE) != n_elem

    def in_map(c, i):
        # Clamp so phantom blocks (odd split / short arrays) stay in bounds;
        # their contributions are zeroed by the in-kernel index mask.
        return (jnp.minimum(c * blocks_per_split + i, num_blocks - 1), 0)

    kernel = _make_kernel(tile_rows, blocks_per_split, n_elem, need_mask)
    return pl.pallas_call(
        kernel,
        out_shape=jax.ShapeDtypeStruct((nc, 4, 8, LANE), jnp.float32),
        grid_spec=pltpu.PrefetchScalarGridSpec(
            num_scalar_prefetch=0,
            grid=(nc, blocks_per_split),
            in_specs=[
                pl.BlockSpec((tile_rows, LANE), in_map),
                pl.BlockSpec((tile_rows, LANE), in_map),
            ],
            out_specs=pl.BlockSpec((1, 4, 8, LANE), lambda c, i: (c, 0, 0, 0)),
        ),
        compiler_params=pltpu.CompilerParams(
            dimension_semantics=("parallel", "arbitrary")),
    )(x2d, t2d)


@functools.partial(jax.jit, static_argnames=("alpha", "gamma", "smooth"))
def dice_focal_loss(inputs, targets, alpha=1.0, gamma=2.0, smooth=1.0):
    """Mirrors DiceFocalLoss.forward: returns (dice_loss, focal_loss)."""
    n_elem = inputs.size
    x = inputs.reshape(-1)       # native dtype; upcast happens inside kernel
    t = targets.reshape(-1)

    # Lane-pack into (rows, 128).  Only a <128-element remainder ever needs a
    # pad (never for 2^k spatial segmentation maps); correctness comes from
    # the in-kernel index mask, not from pad values.
    rem = n_elem % LANE
    if rem:
        pad = LANE - rem
        x = jnp.pad(x, (0, pad))
        t = jnp.pad(t, (0, pad))
    rows = _cdiv(n_elem, LANE)
    x2d = x.reshape(rows, LANE)
    t2d = t.reshape(rows, LANE)

    part = _partial_sums(x2d, t2d, n_elem)       # (nc, 4, 8, 128) f32 partials
    sums = jnp.sum(part, axis=(0, 2, 3))         # tiny wrapper-side reduction
    intersection, p_sum, t_sum, bce_sum = sums[0], sums[1], sums[2], sums[3]

    dice_loss = 1.0 - (2.0 * intersection + smooth) / (p_sum + t_sum + smooth)

    bce_loss = bce_sum / jnp.float32(n_elem)
    bce_prop = jnp.exp(-bce_loss)
    focal_loss = alpha * (1.0 - bce_prop) ** gamma * bce_loss

    return dice_loss, focal_loss


if __name__ == "__main__":
    key = jax.random.PRNGKey(0)
    k1, k2 = jax.random.split(key)

    # Small shapes consistent with a segmentation head output: N, C, H, W.
    x = jax.random.normal(k1, (2, 4, 16, 16), dtype=jnp.float32)   # logits
    tgt = (jax.random.uniform(k2, (2, 4, 16, 16)) > 0.5).astype(jnp.float32)

    dice, focal = dice_focal_loss(x, tgt, alpha=1.0, gamma=2.0, smooth=1.0)
    jax.block_until_ready((dice, focal))

    # Pure-JAX reference check (mirrors the PyTorch module).
    p = jax.nn.sigmoid(x).reshape(-1)
    t = tgt.reshape(-1)
    inter = jnp.sum(p * t)
    dice_ref = 1.0 - (2.0 * inter + 1.0) / (jnp.sum(p) + jnp.sum(t) + 1.0)
    bce_ref = jnp.mean(-(t * jnp.log(p) + (1 - t) * jnp.log(1 - p)))
    focal_ref = 1.0 * (1.0 - jnp.exp(-bce_ref)) ** 2.0 * bce_ref
    assert jnp.allclose(dice, dice_ref, atol=1e-5), (dice, dice_ref)
    assert jnp.allclose(focal, focal_ref, atol=1e-5), (focal, focal_ref)

    print("KERNEL_OK")
</pallas_src>

<mosaic_0001>
module attributes {stable_mosaic.version = 11 : i64} {
  func.func @kernel(%arg0: i32, %arg1: i32, %arg2: memref<32x128xf32, #tpu.memory_space<vmem>>, %arg3: memref<32x128xf32, #tpu.memory_space<vmem>>, %arg4: memref<1x4x8x128xf32, #tpu.memory_space<vmem>>) attributes {dimension_semantics = [#tpu.dimension_semantics<parallel>, #tpu.dimension_semantics<arbitrary>], iteration_bounds = array<i64: 1, 1>, scalar_prefetch = 0 : i64, scratch_operands = 0 : i64, tpu.core_type = #tpu.core_type<tc>, window_params = [{transform_indices = @transform_0, window_bounds = array<i64: 32, 128>}, {transform_indices = @transform_1, window_bounds = array<i64: 32, 128>}, {transform_indices = @transform_2, window_bounds = array<i64: 1, 4, 8, 128>}]} {
    %c0_i32 = arith.constant 0 : i32
    %0 = arith.cmpi eq, %arg1, %c0_i32 : i32
    %1 = arith.extui %0 : i1 to i32
    %c0_i32_0 = arith.constant 0 : i32
    %2 = arith.cmpi ne, %1, %c0_i32_0 : i32
    scf.if %2 {
      %cst_43 = arith.constant 0.000000e+00 : f32
      %72 = vector.broadcast %cst_43 : f32 to vector<1x4x8x128xf32>
      %c0_44 = arith.constant 0 : index
      %c0_45 = arith.constant 0 : index
      %c0_46 = arith.constant 0 : index
      %c0_47 = arith.constant 0 : index
      %73 = vector.load %arg4[%c0_44, %c0_45, %c0_46, %c0_47] : memref<1x4x8x128xf32, #tpu.memory_space<vmem>>, vector<1x4x8x128xf32>
      tpu.vector_store %arg4[%c0_44, %c0_45, %c0_46, %c0_47], %72 {strides = array<i32>} : memref<1x4x8x128xf32, #tpu.memory_space<vmem>>, vector<1x4x8x128xf32>,
    } else {
    }
    %c0 = arith.constant 0 : index
    %c0_1 = arith.constant 0 : index
    %3 = vector.load %arg2[%c0, %c0_1] : memref<32x128xf32, #tpu.memory_space<vmem>>, vector<32x128xf32>
    %c0_2 = arith.constant 0 : index
    %c0_3 = arith.constant 0 : index
    %4 = vector.load %arg3[%c0_2, %c0_3] : memref<32x128xf32, #tpu.memory_space<vmem>>, vector<32x128xf32>
    %cst = arith.constant 5.000000e-01 : f32
    %5 = vector.broadcast %cst : f32 to vector<32x128xf32>
    %6 = arith.mulf %5, %3 : vector<32x128xf32>
    %7 = math.tanh %6 : vector<32x128xf32>
    %cst_4 = arith.constant 1.000000e+00 : f32
    %8 = vector.broadcast %cst_4 : f32 to vector<32x128xf32>
    %9 = arith.addf %7, %8 : vector<32x128xf32>
    %cst_5 = arith.constant 5.000000e-01 : f32
    %10 = vector.broadcast %cst_5 : f32 to vector<32x128xf32>
    %11 = arith.mulf %10, %9 : vector<32x128xf32>
    %12 = math.absf %7 : vector<32x128xf32>
    %cst_6 = arith.constant 1.000000e+00 : f32
    %13 = vector.broadcast %cst_6 : f32 to vector<32x128xf32>
    %14 = arith.addf %12, %13 : vector<32x128xf32>
    %cst_7 = arith.constant 5.000000e-01 : f32
    %15 = vector.broadcast %cst_7 : f32 to vector<32x128xf32>
    %16 = arith.mulf %15, %14 : vector<32x128xf32>
    %17 = math.log %16 : vector<32x128xf32>
    %cst_8 = arith.constant 0.000000e+00 : f32
    %18 = vector.broadcast %cst_8 : f32 to vector<32x128xf32>
    %19 = arith.maximumf %3, %18 : vector<32x128xf32>
    %20 = arith.mulf %3, %4 : vector<32x128xf32>
    %21 = arith.subf %19, %20 : vector<32x128xf32>
    %22 = arith.subf %21, %17 : vector<32x128xf32>
    %23 = tpu.iota {dimensions = array<i32: 0>} : vector<32x128xi32>
    %24 = tpu.iota {dimensions = array<i32: 1>} : vector<32x128xi32>
    %c1_i32 = arith.constant 1 : i32
    %25 = arith.muli %arg0, %c1_i32 : i32
    %26 = arith.addi %25, %arg1 : i32
    %c32_i32 = arith.constant 32 : i32
    %27 = arith.muli %26, %c32_i32 : i32
    %28 = vector.broadcast %27 : i32 to vector<32x128xi32>
    %29 = arith.addi %28, %23 : vector<32x128xi32>
    %c128_i32 = arith.constant 128 : i32
    %30 = vector.broadcast %c128_i32 : i32 to vector<32x128xi32>
    %31 = arith.muli %29, %30 : vector<32x128xi32>
    %32 = arith.addi %31, %24 : vector<32x128xi32>
    %c2048_i32 = arith.constant 2048 : i32
    %33 = vector.broadcast %c2048_i32 : i32 to vector<32x128xi32>
    %34 = arith.cmpi slt, %32, %33 : vector<32x128xi32>
    %cst_9 = arith.constant 0.000000e+00 : f32
    %35 = vector.broadcast %cst_9 : f32 to vector<32x128xf32>
    %36 = arith.select %34, %11, %35 : vector<32x128xi1>, vector<32x128xf32>
    %37 = arith.select %34, %4, %35 : vector<32x128xi1>, vector<32x128xf32>
    %38 = arith.select %34, %22, %35 : vector<32x128xi1>, vector<32x128xf32>
    %39 = arith.mulf %36, %37 : vector<32x128xf32>
    %c0_10 = arith.constant 0 : index
    %c0_11 = arith.constant 0 : index
    %c0_12 = arith.constant 0 : index
    %c0_13 = arith.constant 0 : index
    %40 = vector.load %arg4[%c0_10, %c0_11, %c0_12, %c0_13] : memref<1x4x8x128xf32, #tpu.memory_space<vmem>>, vector<1x1x8x128xf32>
    %41 = vector.shape_cast %40 : vector<1x1x8x128xf32> to vector<8x128xf32>
    %42 = vector.shape_cast %39 : vector<32x128xf32> to vector<4x8x128xf32>
    %cst_14 = arith.constant dense<0.000000e+00> : vector<8x128xf32>
    %43 = vector.multi_reduction <add>, %42, %cst_14 [0] : vector<4x8x128xf32> to vector<8x128xf32>
    %44 = arith.addf %41, %43 : vector<8x128xf32>
    %c0_15 = arith.constant 0 : index
    %c0_16 = arith.constant 0 : index
    %c0_17 = arith.constant 0 : index
    %c0_18 = arith.constant 0 : index
    %45 = vector.load %arg4[%c0_15, %c0_16, %c0_17, %c0_18] : memref<1x4x8x128xf32, #tpu.memory_space<vmem>>, vector<1x1x8x128xf32>
    %46 = vector.shape_cast %45 : vector<1x1x8x128xf32> to vector<8x128xf32>
    %47 = vector.shape_cast %44 : vector<8x128xf32> to vector<1x1x8x128xf32>
    tpu.vector_store %arg4[%c0_15, %c0_16, %c0_17, %c0_18], %47 {strides = array<i32>} : memref<1x4x8x128xf32, #tpu.memory_space<vmem>>, vector<1x1x8x128xf32>,
    %c0_19 = arith.constant 0 : index
    %c1 = arith.constant 1 : index
    %c0_20 = arith.constant 0 : index
    %c0_21 = arith.constant 0 : index
    %48 = vector.load %arg4[%c0_19, %c1, %c0_20, %c0_21] : memref<1x4x8x128xf32, #tpu.memory_space<vmem>>, vector<1x1x8x128xf32>
    %49 = vector.shape_cast %48 : vector<1x1x8x128xf32> to vector<8x128xf32>
    %50 = vector.shape_cast %36 : vector<32x128xf32> to vector<4x8x128xf32>
    %cst_22 = arith.constant dense<0.000000e+00> : vector<8x128xf32>
    %51 = vector.multi_reduction <add>, %50, %cst_22 [0] : vector<4x8x128xf32> to vector<8x128xf32>
    %52 = arith.addf %49, %51 : vector<8x128xf32>
    %c0_23 = arith.constant 0 : index
    %c1_24 = arith.constant 1 : index
    %c0_25 = arith.constant 0 : index
    %c0_26 = arith.constant 0 : index
    %53 = vector.load %arg4[%c0_23, %c1_24, %c0_25, %c0_26] : memref<1x4x8x128xf32, #tpu.memory_space<vmem>>, vector<1x1x8x128xf32>
    %54 = vector.shape_cast %53 : vector<1x1x8x128xf32> to vector<8x128xf32>
    %55 = vector.shape_cast %52 : vector<8x128xf32> to vector<1x1x8x128xf32>
    tpu.vector_store %arg4[%c0_23, %c1_24, %c0_25, %c0_26], %55 {strides = array<i32>} : memref<1x4x8x128xf32, #tpu.memory_space<vmem>>, vector<1x1x8x128xf32>,
    %c0_27 = arith.constant 0 : index
    %c2 = arith.constant 2 : index
    %c0_28 = arith.constant 0 : index
    %c0_29 = arith.constant 0 : index
    %56 = vector.load %arg4[%c0_27, %c2, %c0_28, %c0_29] : memref<1x4x8x128xf32, #tpu.memory_space<vmem>>, vector<1x1x8x128xf32>
    %57 = vector.shape_cast %56 : vector<1x1x8x128xf32> to vector<8x128xf32>
    %58 = vector.shape_cast %37 : vector<32x128xf32> to vector<4x8x128xf32>
    %cst_30 = arith.constant dense<0.000000e+00> : vector<8x128xf32>
    %59 = vector.multi_reduction <add>, %58, %cst_30 [0] : vector<4x8x128xf32> to vector<8x128xf32>
    %60 = arith.addf %57, %59 : vector<8x128xf32>
    %c0_31 = arith.constant 0 : index
    %c2_32 = arith.constant 2 : index
    %c0_33 = arith.constant 0 : index
    %c0_34 = arith.constant 0 : index
    %61 = vector.load %arg4[%c0_31, %c2_32, %c0_33, %c0_34] : memref<1x4x8x128xf32, #tpu.memory_space<vmem>>, vector<1x1x8x128xf32>
    %62 = vector.shape_cast %61 : vector<1x1x8x128xf32> to vector<8x128xf32>
    %63 = vector.shape_cast %60 : vector<8x128xf32> to vector<1x1x8x128xf32>
    tpu.vector_store %arg4[%c0_31, %c2_32, %c0_33, %c0_34], %63 {strides = array<i32>} : memref<1x4x8x128xf32, #tpu.memory_space<vmem>>, vector<1x1x8x128xf32>,
    %c0_35 = arith.constant 0 : index
    %c3 = arith.constant 3 : index
    %c0_36 = arith.constant 0 : index
    %c0_37 = arith.constant 0 : index
    %64 = vector.load %arg4[%c0_35, %c3, %c0_36, %c0_37] : memref<1x4x8x128xf32, #tpu.memory_space<vmem>>, vector<1x1x8x128xf32>
    %65 = vector.shape_cast %64 : vector<1x1x8x128xf32> to vector<8x128xf32>
    %66 = vector.shape_cast %38 : vector<32x128xf32> to vector<4x8x128xf32>
    %cst_38 = arith.constant dense<0.000000e+00> : vector<8x128xf32>
    %67 = vector.multi_reduction <add>, %66, %cst_38 [0] : vector<4x8x128xf32> to vector<8x128xf32>
    %68 = arith.addf %65, %67 : vector<8x128xf32>
    %c0_39 = arith.constant 0 : index
    %c3_40 = arith.constant 3 : index
    %c0_41 = arith.constant 0 : index
    %c0_42 = arith.constant 0 : index
    %69 = vector.load %arg4[%c0_39, %c3_40, %c0_41, %c0_42] : memref<1x4x8x128xf32, #tpu.memory_space<vmem>>, vector<1x1x8x128xf32>
    %70 = vector.shape_cast %69 : vector<1x1x8x128xf32> to vector<8x128xf32>
    %71 = vector.shape_cast %68 : vector<8x128xf32> to vector<1x1x8x128xf32>
    tpu.vector_store %arg4[%c0_39, %c3_40, %c0_41, %c0_42], %71 {strides = array<i32>} : memref<1x4x8x128xf32, #tpu.memory_space<vmem>>, vector<1x1x8x128xf32>,
    return
  }
  func.func @transform_0(%arg0: i32, %arg1: i32) -> (i32, i32) {
    %c1_i32 = arith.constant 1 : i32
    %0 = arith.muli %arg0, %c1_i32 : i32
    %1 = arith.addi %0, %arg1 : i32
    %c0_i32 = arith.constant 0 : i32
    %2 = arith.minsi %1, %c0_i32 : i32
    %c0_i32_0 = arith.constant 0 : i32
    %c0_i32_1 = arith.constant 0 : i32
    return %2, %c0_i32_0 : i32, i32
  }
  func.func @transform_1(%arg0: i32, %arg1: i32) -> (i32, i32) {
    %c1_i32 = arith.constant 1 : i32
    %0 = arith.muli %arg0, %c1_i32 : i32
    %1 = arith.addi %0, %arg1 : i32
    %c0_i32 = arith.constant 0 : i32
    %2 = arith.minsi %1, %c0_i32 : i32
    %c0_i32_0 = arith.constant 0 : i32
    %c0_i32_1 = arith.constant 0 : i32
    return %2, %c0_i32_0 : i32, i32
  }
  func.func @transform_2(%arg0: i32, %arg1: i32) -> (i32, i32, i32, i32) {
    %c0_i32 = arith.constant 0 : i32
    %c0_i32_0 = arith.constant 0 : i32
    %c0_i32_1 = arith.constant 0 : i32
    %c0_i32_2 = arith.constant 0 : i32
    return %arg0, %c0_i32, %c0_i32_0, %c0_i32_1 : i32, i32, i32, i32
  }
}

</mosaic_0001>

<llo_original>
// kernel: dice_focal_loss.1
$region0: #{dice_focal_loss.1}
  #allocation0 [shape = 'u32[]', space=smem, size = 0x4, offset = 0x4, fixed_abs, tag = 'smem constant byte address 0x4 - core index']
  #allocation1 [shape = 'u32[144,128]{1,0:T(1,128)}', space=vmem, size = 0x12000, scoped, tag = 'internal scratch']
  %s0 = inlined_call_operand.vmem [shape: f32[16,128], index: 0, kind: input, shape index: {}]
  %s1 = inlined_call_operand.vmem [shape: f32[16,128], index: 1, kind: input, shape index: {}]
  %s2 = inlined_call_operand.vmem [shape: f32[1,4,8,128], index: 2, kind: output, shape index: {}]
  %s3 = sld [smem:[#allocation0]]
  $region22: #{dice_focal_loss.1} parent=0
    _
  %s5 = ssub.s32 1, %s3
  %s6 = scalar_select 0, %s5, %s3
  // Predicated region
  $region2: #{dice_focal_loss.1} parent=0 // pred_check
    _
  $region3: #{dice_focal_loss.1} parent=0 // pred_check_branch
    %8 = sbr.rel (0) target = $region5
  $region4: #{dice_focal_loss.1} parent=0 // pred_region
    %s9 = sadd.s32 0, 0
    %p10 = scmp.lt.s32.totalorder %s9, 0
    %s11 = scalar_select %p10, %s9, 0
    %s12 = smul.u32 4, %s11
    %s13 = ssub.s32 2, %s12
    %s14 = smul.u32 128, %s13
    %p15 = scmp.lt.s32.totalorder %s12, 1
    %s16 = scalar_select %p15, %s12, 1
    %s17 = smul.addr %s16, 8
    %s18 = scalar_lea.vmem %s0, %s17
    %s19 = sadd.s32 0, 0
    %p20 = scmp.lt.s32.totalorder %s19, 0
    %s21 = scalar_select %p20, %s19, 0
    %s22 = smul.u32 4, %s21
    %s23 = ssub.s32 2, %s22
    %s24 = smul.u32 128, %s23
  $region5: #{dice_focal_loss.1} parent=0 // pred_fallthru
    _
  // Predicated region
  $region6: #{dice_focal_loss.1} parent=0 // pred_check
    _
  $region7: #{dice_focal_loss.1} parent=0 // pred_check_branch
    %26 = sbr.rel (0) target = $region9
  $region8: #{dice_focal_loss.1} parent=0 // pred_region
    %s27 = sadd.s32 0, 0
    %p28 = scmp.lt.s32.totalorder %s27, 0
    %s29 = scalar_select %p28, %s27, 0
    %s30 = smul.u32 4, %s29
    %s31 = ssub.s32 2, %s30
    %s32 = smul.u32 128, %s31
    %p33 = scmp.lt.s32.totalorder %s30, 1
    %s34 = scalar_select %p33, %s30, 1
    %s35 = smul.addr %s34, 8
    %s36 = scalar_lea.vmem %s1, %s35
    %s37 = sadd.s32 0, 0
    %p38 = scmp.lt.s32.totalorder %s37, 0
    %s39 = scalar_select %p38, %s37, 0
    %s40 = smul.u32 4, %s39
    %s41 = ssub.s32 2, %s40
    %s42 = smul.u32 128, %s41
  $region9: #{dice_focal_loss.1} parent=0 // pred_fallthru
    _
  %s43 = sadd.s32 0, 0
  %p44 = scmp.lt.s32.totalorder %s43, 0
  %s45 = scalar_select %p44, %s43, 0
  %s46 = smul.u32 4, %s45
  %s47 = ssub.s32 2, %s46
  %s48 = smul.u32 128, %s47
  %p49 = scmp.lt.s32.totalorder %s46, 1
  %s50 = scalar_select %p49, %s46, 1
  %s51 = smul.addr %s50, 8
  %s52 = scalar_lea.vmem %s0, %s51
  %s53 = sadd.s32 0, 0
  %p54 = scmp.lt.s32.totalorder %s53, 0
  %s55 = scalar_select %p54, %s53, 0
  %s56 = smul.u32 4, %s55
  %s57 = ssub.s32 2, %s56
  %s58 = smul.u32 128, %s57
  %p59 = scmp.lt.s32.totalorder %s56, 1
  %s60 = scalar_select %p59, %s56, 1
  %s61 = smul.addr %s60, 8
  %s62 = scalar_lea.vmem %s1, %s61
  %s63 = sadd.s32 0, 0
  %p64 = scmp.lt.s32.totalorder %s63, 0
  %s65 = scalar_select %p64, %s63, 0
  %s66 = smul.u32 4, %s65
  %s67 = ssub.s32 2, %s66
  %s68 = smul.u32 128, %s67
  %p69 = scmp.lt.s32.totalorder %s66, 1
  %s70 = scalar_select %p69, %s66, 1
  %s71 = smul.addr %s70, 8
  %s72 = scalar_lea.vmem %s0, %s71
  %s73 = sadd.s32 0, 0
  %p74 = scmp.lt.s32.totalorder %s73, 0
  %s75 = scalar_select %p74, %s73, 0
  %s76 = smul.u32 4, %s75
  %s77 = ssub.s32 2, %s76
  %s78 = smul.u32 128, %s77
  %s79 = sadd.s32 0, 0
  %p80 = scmp.lt.s32.totalorder %s79, 0
  %s81 = scalar_select %p80, %s79, 0
  %s82 = smul.u32 4, %s81
  %s83 = ssub.s32 2, %s82
  %s84 = smul.u32 128, %s83
  %p85 = scmp.lt.s32.totalorder %s82, 1
  %s86 = scalar_select %p85, %s82, 1
  %s87 = smul.addr %s86, 8
  %s88 = scalar_lea.vmem %s1, %s87
  %s89 = sadd.s32 0, 0
  %p90 = scmp.lt.s32.totalorder %s89, 0
  %s91 = scalar_select %p90, %s89, 0
  %s92 = smul.u32 4, %s91
  %s93 = ssub.s32 2, %s92
  %s94 = smul.u32 128, %s93
  %p95 = scmp.eq.s32.totalorder 0, 0
  // Predicated region
  $region10: #{dice_focal_loss.1} parent=0 // pred_check
    %p96 = pneg %p95
  $region11: #{dice_focal_loss.1} parent=0 // pred_check_branch
    %98 = sbr.rel (%p96) target = $region13
  $region12: #{dice_focal_loss.1} parent=0 // pred_region
    %99 = vst [vmem:[%s2] sm:$0xff] 0.0
    %100 = vst [vmem:[%s2 + $0x8] sm:$0xff] 0.0
    %101 = vst [vmem:[%s2 + $0x10] sm:$0xff] 0.0
    %102 = vst [vmem:[%s2 + $0x18] sm:$0xff] 0.0
  $region13: #{dice_focal_loss.1} parent=0 // pred_fallthru
    _
  %v103 = vld [vmem:[%s72] sm:$0xff]
  %v104 = vld [vmem:[%s72 + $0x8] sm:$0xff]
  %v105 = vld [vmem:[%s72 + $0x10] sm:$0xff]
  %v106 = vld [vmem:[%s72 + $0x18] sm:$0xff]
  %v107 = vld [vmem:[%s88] sm:$0xff]
  %v108 = vld [vmem:[%s88 + $0x8] sm:$0xff]
  %v109 = vld [vmem:[%s88 + $0x10] sm:$0xff]
  %v110 = vld [vmem:[%s88 + $0x18] sm:$0xff]
  %v111 = vmul.f32 %v103, 0.5
  %v112 = vmul.f32 %v104, 0.5
  %v113 = vmul.f32 %v105, 0.5
  %v114 = vmul.f32 %v106, 0.5
  %v115 = vtanh.pop %v111
  %v116 = vtanh.pop %v112
  %v117 = vtanh.pop %v113
  %v118 = vtanh.pop %v114
  %v119 = vadd.f32 %v115, 1.0
  %v120 = vadd.f32 %v116, 1.0
  %v121 = vadd.f32 %v117, 1.0
  %v122 = vadd.f32 %v118, 1.0
  %v123 = vmul.f32 %v119, 0.5
  %v124 = vmul.f32 %v120, 0.5
  %v125 = vmul.f32 %v121, 0.5
  %v126 = vmul.f32 %v122, 0.5
  %v127 = vand.u32 2147483647, %v115
  %v128 = vand.u32 2147483647, %v116
  %v129 = vand.u32 2147483647, %v117
  %v130 = vand.u32 2147483647, %v118
  %v131 = vadd.f32 %v127, 1.0
  %v132 = vadd.f32 %v128, 1.0
  %v133 = vadd.f32 %v129, 1.0
  %v134 = vadd.f32 %v130, 1.0
  %v135 = vmul.f32 %v131, 0.5
  %v136 = vmul.f32 %v132, 0.5
  %v137 = vmul.f32 %v133, 0.5
  %v138 = vmul.f32 %v134, 0.5
  %v139 = vlog2.pop %v135
  %v140 = vmul.f32 %v139, 0.6931472
  %v141 = vlog2.pop %v136
  %v142 = vmul.f32 %v141, 0.6931472
  %v143 = vlog2.pop %v137
  %v144 = vmul.f32 %v143, 0.6931472
  %v145 = vlog2.pop %v138
  %v146 = vmul.f32 %v145, 0.6931472
  %v147 = vmax.f32 %v103, 0.0
  %v148 = vmax.f32 %v104, 0.0
  %v149 = vmax.f32 %v105, 0.0
  %v150 = vmax.f32 %v106, 0.0
  %v151 = vmul.f32 %v103, %v107
  %v152 = vmul.f32 %v104, %v108
  %v153 = vmul.f32 %v105, %v109
  %v154 = vmul.f32 %v106, %v110
  %v155 = vsub.f32 %v147, %v151
  %v156 = vsub.f32 %v148, %v152
  %v157 = vsub.f32 %v149, %v153
  %v158 = vsub.f32 %v150, %v154
  %v159 = vsub.f32 %v155, %v140
  %v160 = vsub.f32 %v156, %v142
  %v161 = vsub.f32 %v157, %v144
  %v162 = vsub.f32 %v158, %v146
  %v163 = vlaneseq
  %v164 = vshrl.u32 %v163, 7
  %v165 = vadd.s32 %v164, 8
  %v166 = vadd.s32 %v164, 16
  %v167 = vadd.s32 %v164, 24
  %v168 = vlaneseq
  %v169 = vand.u32 %v168, 127
  %s170 = sadd.s32 0, 0
  %s171 = smul.u32 %s170, 32
  %v172 = vstv %s171
  %v173 = vadd.s32 %v172, %v164
  %v174 = vadd.s32 %v172, %v165
  %v175 = vadd.s32 %v172, %v166
  %v176 = vadd.s32 %v172, %v167
  %v177 = vmul.u32 %v173, 128
  %v178 = vmul.u32 %v174, 128
  %v179 = vmul.u32 %v175, 128
  %v180 = vmul.u32 %v176, 128
  %v181 = vadd.s32 %v177, %v169
  %v182 = vadd.s32 %v178, %v169
  %v183 = vadd.s32 %v179, %v169
  %v184 = vadd.s32 %v180, %v169
  %vm185 = vcmp.lt.s32.totalorder %v181, 2048
  %vm186 = vcmp.lt.s32.totalorder %v182, 2048
  %vm187 = vcmp.lt.s32.totalorder %v183, 2048
  %vm188 = vcmp.lt.s32.totalorder %v184, 2048
  %v189 = vsel %vm185, %v123, 0.0
  %v190 = vsel %vm186, %v124, 0.0
  %v191 = vsel %vm187, %v125, 0.0
  %v192 = vsel %vm188, %v126, 0.0
  %v193 = vsel %vm185, %v107, 0.0
  %v194 = vsel %vm186, %v108, 0.0
  %v195 = vsel %vm187, %v109, 0.0
  %v196 = vsel %vm188, %v110, 0.0
  %v197 = vsel %vm185, %v159, 0.0
  %v198 = vsel %vm186, %v160, 0.0
  %v199 = vsel %vm187, %v161, 0.0
  %v200 = vsel %vm188, %v162, 0.0
  %v201 = vmul.f32 %v189, %v193
  %v202 = vmul.f32 %v190, %v194
  %v203 = vmul.f32 %v191, %v195
  %v204 = vmul.f32 %v192, %v196
  %v205 = vld [vmem:[%s2] sm:$0xff]
  %v206 = vadd.f32 %v201, %v202
  %v207 = vadd.f32 %v206, %v203
  %v208 = vadd.f32 %v207, %v204
  %v209 = vadd.f32 %v205, %v208
  %210 = vst [vmem:[%s2] sm:$0xff] %v209
  %s211 = scalar_lea.vmem %s2, 8
  %v212 = vld [vmem:[%s211] sm:$0xff]
  %v213 = vadd.f32 %v189, %v190
  %v214 = vadd.f32 %v213, %v191
  %v215 = vadd.f32 %v214, %v192
  %v216 = vadd.f32 %v212, %v215
  %217 = vst [vmem:[%s211] sm:$0xff] %v216
  %s218 = scalar_lea.vmem %s2, 16
  %v219 = vld [vmem:[%s218] sm:$0xff]
  %v220 = vadd.f32 %v193, %v194
  %v221 = vadd.f32 %v220, %v195
  %v222 = vadd.f32 %v221, %v196
  %v223 = vadd.f32 %v219, %v222
  %224 = vst [vmem:[%s218] sm:$0xff] %v223
  %s225 = scalar_lea.vmem %s2, 24
  %v226 = vld [vmem:[%s225] sm:$0xff]
  %v227 = vadd.f32 %v197, %v198
  %v228 = vadd.f32 %v227, %v199
  %v229 = vadd.f32 %v228, %v200
  %v230 = vadd.f32 %v226, %v229
  %231 = vst [vmem:[%s225] sm:$0xff] %v230
  // Predicated region
  $region14: #{dice_focal_loss.1} parent=0 // pred_check
    _
  $region15: #{dice_focal_loss.1} parent=0 // pred_check_branch
    %233 = sbr.rel (0) target = $region17
  $region16: #{dice_focal_loss.1} parent=0 // pred_region
    _
  $region17: #{dice_focal_loss.1} parent=0 // pred_fallthru
    _
  // Predicated region
  $region18: #{dice_focal_loss.1} parent=0 // pred_check
    _
  $region19: #{dice_focal_loss.1} parent=0 // pred_check_branch
    %235 = sbr.rel (0) target = $region21
  $region20: #{dice_focal_loss.1} parent=0 // pred_region
    _
  $region21: #{dice_focal_loss.1} parent=0 // pred_fallthru
    _

</llo_original>
